<compile_context>
chip_gen: v7x
topology: tpu7x:2x2x1
jax: 0.10.0
libtpu: 0.0.40
codegen_flags: <defaults>
</compile_context>

<pallas_src>
import math

import jax
import jax.numpy as jnp
from jax import lax
from jax.experimental import pallas as pl
from jax.experimental.pallas import tpu as pltpu

P_DROP = 0.2                       # F.dropout(p=0.2, training=True)
INV_KEEP = 1.0 / (1.0 - P_DROP)
INV_SQRT2 = 1.0 / math.sqrt(2.0)
# keep element iff (hash & 0xFFFFFF) >= DROP_THRESH_24  ->  P(keep) = 1 - p
DROP_THRESH_24 = int(P_DROP * (1 << 24))

# int32 two's-complement values of the usual murmur / golden-ratio constants.
_HC_ROW = -1640531527      # 0x9E3779B9
_HC_M = 0x7FEB352D
_HC_MIX1 = -2048144789     # 0x85EBCA6B
_HC_MIX2 = -1028477387     # 0xC2B2AE35


def _attn_out_kernel(seed_ref, k_ref, q_ref, v_ref, out_ref):
    """Writes one (TR, TB, 4*S) block of the packed output (i, b, m*4+c).

    seed_ref : (1,) int32 SMEM    dropout seed (scalar prefetch)
    k_ref    : (TR, 1)            k_flat block (column), tiled over grid axis 1
    q_ref    : (1, 4*S)           q_flat pre-scaled & lane-repeated, resident
    v_ref    : (1, TB, 4*S)       value lane-tiled: v_exp[b, m*4+c] = v[b, c]
    out_ref  : (TR, TB, 4*S)      out[i,b,m*4+c] = drop(q[m]*k[i]/sqrt 2)*v[b,c]
    """
    tr = k_ref.shape[0]
    lane = out_ref.shape[-1]

    # In-kernel dropout mask (counter-based hash, all plain VPU int32 ops).
    # Depends only on (seed, global row index, m) -> unique per (i, m), shared
    # across the c group (m = lane >> 2) and across b-tiles (no program_id(0)).
    row = pl.program_id(1) * tr + lax.broadcasted_iota(jnp.int32, (tr, lane), 0)
    m = lax.broadcasted_iota(jnp.int32, (tr, lane), 1) >> 2
    h = seed_ref[0] + row * jnp.int32(_HC_ROW) + m * jnp.int32(_HC_M)
    h = h ^ (h >> 16)
    h = h * jnp.int32(_HC_MIX1)
    h = h ^ (h >> 13)
    h = h * jnp.int32(_HC_MIX2)
    h = h ^ (h >> 16)
    keep = (h & jnp.int32(0x00FFFFFF)) >= jnp.int32(DROP_THRESH_24)

    # q already carries the 1/sqrt(2) and 1/(1-p) scales; dropped elems -> 0.
    d = jnp.where(keep, k_ref[...] * q_ref[...], 0.0)            # (TR, 4S)  VPU
    # out[i, b, m*4+c] = d[i, m*4+c] * v[b, c]: one broadcast-multiply store.
    out_ref[...] = d[:, None, :] * v_ref[...]                    # (TR, TB, 4S)


def _tile_candidates(n):
    """Legal tile sizes for a second-minor dim of extent n (descending):
    n itself, plus every multiple-of-8 divisor of n."""
    cands = {n}
    if n % 8 == 0:
        cands.update(t for t in range(8, n, 8) if n % t == 0)
    return sorted(cands, reverse=True)


def _pick_tiles(S, B, budget_bytes=4 << 20, min_tile_bytes=128 << 10):
    """Pick (TR, TB) so the (TR, TB, 4*S) f32 output block fits budget_bytes.

    Prefers keeping the full b extent and shrinking TR first, then shrinks TB.
    No "whole array" fallback: if nothing fits, return the smallest legal tile.
    """
    lane_bytes = 4 * S * 4
    tr_cands = _tile_candidates(S)
    tb_cands = _tile_candidates(B)
    for tb in tb_cands:
        for tr in tr_cands:
            if tr * tb * lane_bytes > budget_bytes:
                continue
            # Keep >= 2 steps on the i axis when it stays cheap: lets the
            # "parallel" grid shard across v7x's two TensorCores and overlaps
            # the output writeback DMA with compute.
            if S // tr < 2:
                for tr2 in tr_cands:
                    if tr2 < tr and tr2 * tb * lane_bytes >= min_tile_bytes:
                        tr = tr2
                        break
            return tr, tb
    return tr_cands[-1], tb_cands[-1]


def model_forward(x, params, dropout_key):
    """x: (B, 1, 2) float32.  Returns (S, B, S, 4) float32 with S = 4 * B."""
    B = x.shape[0]
    assert x.shape[1:] == (1, 2), "reference forward requires input (B, 1, 2)"
    Wq, bq, Wk, bk, Wv, bv = params          # W*: (4, 2) torch layout, b*: (4,)
    S = 4 * B                                # seq_len implied by the .view
    LANE = 4 * S                             # packed lane axis m*4 + c

    x2 = x.reshape(B, 2).astype(jnp.float32)
    # Tiny O(B) projections stay in the XLA wrapper; everything O(S^2 * B)
    # runs inside the kernel.
    q_flat = (x2 @ Wq.T + bq).reshape(-1)            # (S,)
    k_flat = (x2 @ Wk.T + bk).reshape(-1)            # (S,)
    v = x2 @ Wv.T + bv                               # (B, 4)

    # Fold 1/sqrt(2) and the dropout 1/(1-p) rescale into q (O(S), free) and
    # lane-repeat it so the kernel needs no in-kernel relayout.
    q_rep = jnp.repeat(q_flat * (INV_SQRT2 * INV_KEEP), 4).reshape(1, LANE)
    k_col = k_flat.reshape(S, 1)
    # Value expanded onto the packed lane axis: v_exp[b, m*4+c] = v[b, c].
    v_exp = jnp.tile(v, (1, S)).reshape(1, B, LANE)

    seed = jax.random.randint(dropout_key, (1,), 0,
                              jnp.iinfo(jnp.int32).max, dtype=jnp.int32)

    TR, TB = _pick_tiles(S, B)
    grid = (B // TB, S // TR)      # b-tiles outer (value block stays put
                                   # across the inner i sweep), i-tiles inner.

    out_bytes = S * B * LANE * 4
    in_bytes = (S + LANE + B * LANE) * 4
    cost = pl.CostEstimate(flops=2 * S * B * LANE, transcendentals=0,
                           bytes_accessed=out_bytes + in_bytes)

    out_packed = pl.pallas_call(
        _attn_out_kernel,
        out_shape=jax.ShapeDtypeStruct((S, B, LANE), jnp.float32),
        grid_spec=pltpu.PrefetchScalarGridSpec(
            num_scalar_prefetch=1,
            grid=grid,
            in_specs=[
                pl.BlockSpec((TR, 1), lambda b, i, seed: (i, 0)),        # k
                pl.BlockSpec((1, LANE), lambda b, i, seed: (0, 0)),      # q
                pl.BlockSpec((1, TB, LANE), lambda b, i, seed: (0, b, 0)),  # v
            ],
            out_specs=pl.BlockSpec((TR, TB, LANE),
                                   lambda b, i, seed: (i, b, 0)),
        ),
        compiler_params=pltpu.CompilerParams(
            dimension_semantics=("parallel", "parallel")),
        cost_estimate=cost,
    )(seed, k_col, q_rep, v_exp)

    # (S, B, S*4) with lane index m*4+c is byte-identical to row-major
    # (S, B, S, 4): pure metadata reshape, no transpose, no extra HBM pass.
    return out_packed.reshape(S, B, S, 4)


if __name__ == "__main__":
    key = jax.random.PRNGKey(0)
    kx, kq, kk, kv, kd = jax.random.split(key, 5)

    B = 2
    x = jax.random.normal(kx, (B, 1, 2), dtype=jnp.float32)

    def init_linear(k, fan_in, fan_out):
        kw, kb = jax.random.split(k)
        bound = 1.0 / math.sqrt(fan_in)
        W = jax.random.uniform(kw, (fan_out, fan_in), jnp.float32, -bound, bound)
        b = jax.random.uniform(kb, (fan_out,), jnp.float32, -bound, bound)
        return W, b

    Wq, bq = init_linear(kq, 2, 4)
    Wk, bk = init_linear(kk, 2, 4)
    Wv, bv = init_linear(kv, 2, 4)

    out = model_forward(x, (Wq, bq, Wk, bk, Wv, bv), kd)
    out = jax.block_until_ready(out)

    S = 4 * B
    assert out.shape == (S, B, S, 4)
    assert bool(jnp.all(jnp.isfinite(out)))

    # Structural check vs. a dropout-free pure-JAX reference: every element
    # must be either 0 (dropped) or ref/(1-p) (kept).
    x2 = x.reshape(B, 2)
    q_flat = (x2 @ Wq.T + bq).reshape(-1)
    k_flat = (x2 @ Wk.T + bk).reshape(-1)
    v = x2 @ Wv.T + bv
    ref = jnp.einsum("i,m,bc->ibmc", k_flat, q_flat, v) * INV_SQRT2
    err = jnp.minimum(jnp.abs(out), jnp.abs(out - ref * INV_KEEP))
    assert bool(jnp.all(err < 1e-4 * (1.0 + jnp.abs(ref)))), "mismatch vs reference"

    # The dropout mask must be shared across (b, c) for each (i, m), exactly
    # as in the reference (mask applied to qk before the matmul with value).
    dropped = jnp.abs(out) < 1e-30
    assert bool(jnp.all(dropped == dropped[:, :1, :, :1])), "mask not shared over (b, c)"

    print("KERNEL_OK")
</pallas_src>

<mosaic_0001>
module attributes {stable_mosaic.version = 11 : i64} {
  func.func @_attn_out_kernel(%arg0: i32, %arg1: i32, %arg2: memref<1xi32, #tpu.memory_space<smem>>, %arg3: memref<8x1xf32, #tpu.memory_space<vmem>>, %arg4: memref<1x32xf32, #tpu.memory_space<vmem>>, %arg5: memref<1x2x32xf32, #tpu.memory_space<vmem>>, %arg6: memref<8x2x32xf32, #tpu.memory_space<vmem>>) attributes {dimension_semantics = [#tpu.dimension_semantics<parallel>, #tpu.dimension_semantics<parallel>], iteration_bounds = array<i64: 1, 1>, scalar_prefetch = 1 : i64, scratch_operands = 0 : i64, tpu.core_type = #tpu.core_type<tc>, window_params = [{transform_indices = @transform_0, window_bounds = array<i64: 8, 1>}, {pipeline_mode = #tpu.pipeline_mode<synchronous>, transform_indices = @transform_1, window_bounds = array<i64: 1, 32>}, {transform_indices = @transform_2, window_bounds = array<i64: 1, 2, 32>}, {transform_indices = @transform_3, window_bounds = array<i64: 8, 2, 32>}]} {
    %c8_i32 = arith.constant 8 : i32
    %0 = arith.muli %arg1, %c8_i32 : i32
    %1 = tpu.iota {dimensions = array<i32: 0>} : vector<8x32xi32>
    %2 = vector.broadcast %0 : i32 to vector<8x32xi32>
    %3 = arith.addi %2, %1 : vector<8x32xi32>
    %4 = tpu.iota {dimensions = array<i32: 1>} : vector<8x32xi32>
    %c2_i32 = arith.constant 2 : i32
    %5 = vector.broadcast %c2_i32 : i32 to vector<8x32xi32>
    %6 = arith.shrsi %4, %5 : vector<8x32xi32>
    %c0 = arith.constant 0 : index
    %7 = memref.load %arg2[%c0] : memref<1xi32, #tpu.memory_space<smem>>
    %c-1640531527_i32 = arith.constant -1640531527 : i32
    %8 = vector.broadcast %c-1640531527_i32 : i32 to vector<8x32xi32>
    %9 = arith.muli %3, %8 : vector<8x32xi32>
    %10 = vector.broadcast %7 : i32 to vector<8x32xi32>
    %11 = arith.addi %10, %9 : vector<8x32xi32>
    %c2146121005_i32 = arith.constant 2146121005 : i32
    %12 = vector.broadcast %c2146121005_i32 : i32 to vector<8x32xi32>
    %13 = arith.muli %6, %12 : vector<8x32xi32>
    %14 = arith.addi %11, %13 : vector<8x32xi32>
    %c16_i32 = arith.constant 16 : i32
    %15 = vector.broadcast %c16_i32 : i32 to vector<8x32xi32>
    %16 = arith.shrsi %14, %15 : vector<8x32xi32>
    %17 = arith.xori %14, %16 : vector<8x32xi32>
    %c-2048144789_i32 = arith.constant -2048144789 : i32
    %18 = vector.broadcast %c-2048144789_i32 : i32 to vector<8x32xi32>
    %19 = arith.muli %17, %18 : vector<8x32xi32>
    %c13_i32 = arith.constant 13 : i32
    %20 = vector.broadcast %c13_i32 : i32 to vector<8x32xi32>
    %21 = arith.shrsi %19, %20 : vector<8x32xi32>
    %22 = arith.xori %19, %21 : vector<8x32xi32>
    %c-1028477387_i32 = arith.constant -1028477387 : i32
    %23 = vector.broadcast %c-1028477387_i32 : i32 to vector<8x32xi32>
    %24 = arith.muli %22, %23 : vector<8x32xi32>
    %c16_i32_0 = arith.constant 16 : i32
    %25 = vector.broadcast %c16_i32_0 : i32 to vector<8x32xi32>
    %26 = arith.shrsi %24, %25 : vector<8x32xi32>
    %27 = arith.xori %24, %26 : vector<8x32xi32>
    %c16777215_i32 = arith.constant 16777215 : i32
    %28 = vector.broadcast %c16777215_i32 : i32 to vector<8x32xi32>
    %29 = arith.andi %27, %28 : vector<8x32xi32>
    %c3355443_i32 = arith.constant 3355443 : i32
    %30 = vector.broadcast %c3355443_i32 : i32 to vector<8x32xi32>
    %31 = arith.cmpi sge, %29, %30 : vector<8x32xi32>
    %c0_1 = arith.constant 0 : index
    %c0_2 = arith.constant 0 : index
    %32 = vector.load %arg3[%c0_1, %c0_2] : memref<8x1xf32, #tpu.memory_space<vmem>>, vector<8x1xf32>
    %c0_3 = arith.constant 0 : index
    %c0_4 = arith.constant 0 : index
    %33 = vector.load %arg4[%c0_3, %c0_4] : memref<1x32xf32, #tpu.memory_space<vmem>>, vector<1x32xf32>
    %34 = vector.broadcast %32 : vector<8x1xf32> to vector<8x32xf32>
    %35 = vector.broadcast %33 : vector<1x32xf32> to vector<8x32xf32>
    %36 = arith.mulf %34, %35 : vector<8x32xf32>
    %cst = arith.constant 0.000000e+00 : f32
    %37 = vector.broadcast %cst : f32 to vector<8x32xf32>
    %38 = arith.select %31, %36, %37 : vector<8x32xi1>, vector<8x32xf32>
    %39 = vector.shape_cast %38 : vector<8x32xf32> to vector<8x1x32xf32>
    %c0_5 = arith.constant 0 : index
    %c0_6 = arith.constant 0 : index
    %c0_7 = arith.constant 0 : index
    %40 = vector.load %arg5[%c0_5, %c0_6, %c0_7] : memref<1x2x32xf32, #tpu.memory_space<vmem>>, vector<1x2x32xf32>
    %41 = vector.broadcast %39 : vector<8x1x32xf32> to vector<8x2x32xf32>
    %42 = vector.broadcast %40 : vector<1x2x32xf32> to vector<8x2x32xf32>
    %43 = arith.mulf %41, %42 : vector<8x2x32xf32>
    %c0_8 = arith.constant 0 : index
    %c0_9 = arith.constant 0 : index
    %c0_10 = arith.constant 0 : index
    %44 = vector.load %arg6[%c0_8, %c0_9, %c0_10] : memref<8x2x32xf32, #tpu.memory_space<vmem>>, vector<8x2x32xf32>
    tpu.vector_store %arg6[%c0_8, %c0_9, %c0_10], %43 {strides = array<i32>} : memref<8x2x32xf32, #tpu.memory_space<vmem>>, vector<8x2x32xf32>,
    return
  }
  func.func @transform_0(%arg0: i32, %arg1: i32, %arg2: memref<1xi32, #tpu.memory_space<smem>>) -> (i32, i32) {
    %c0_i32 = arith.constant 0 : i32
    %c0_i32_0 = arith.constant 0 : i32
    return %arg1, %c0_i32 : i32, i32
  }
  func.func @transform_1(%arg0: i32, %arg1: i32, %arg2: memref<1xi32, #tpu.memory_space<smem>>) -> (i32, i32) {
    %c0_i32 = arith.constant 0 : i32
    %c0_i32_0 = arith.constant 0 : i32
    %c0_i32_1 = arith.constant 0 : i32
    return %c0_i32, %c0_i32_0 : i32, i32
  }
  func.func @transform_2(%arg0: i32, %arg1: i32, %arg2: memref<1xi32, #tpu.memory_space<smem>>) -> (i32, i32, i32) {
    %c0_i32 = arith.constant 0 : i32
    %c0_i32_0 = arith.constant 0 : i32
    %c0_i32_1 = arith.constant 0 : i32
    return %c0_i32, %arg0, %c0_i32_0 : i32, i32, i32
  }
  func.func @transform_3(%arg0: i32, %arg1: i32, %arg2: memref<1xi32, #tpu.memory_space<smem>>) -> (i32, i32, i32) {
    %c0_i32 = arith.constant 0 : i32
    %c0_i32_0 = arith.constant 0 : i32
    return %arg1, %arg0, %c0_i32 : i32, i32, i32
  }
}

</mosaic_0001>

<llo_original>
// kernel: tpu_custom_call.1
$region0: #{tpu_custom_call.1}
  #allocation0 [shape = 'u32[]', space=smem, size = 0x4, offset = 0x4, fixed_abs, tag = 'smem constant byte address 0x4 - core index']
  #allocation1 [shape = 'u32[144,128]{1,0:T(1,128)}', space=vmem, size = 0x12000, scoped, tag = 'internal scratch']
  #allocation2 [shape = 's32[1]{0}', space=sflag, size = 0x4, scoped, tag = 'scoped memory for tpu_custom_call.1']
  #allocation3 [shape = 's32[1]{0:T(128)S(6)}', space=smem, size = 0x200, scoped, tag = 'prefetched SMEM operand 0']
  %s0 = inlined_call_operand.<no memory space> [shape: s32[1], index: 0, kind: input, shape index: {}]
  %s1 = inlined_call_operand.vmem [shape: f32[8,1], index: 1, kind: input, shape index: {}]
  %s2 = inlined_call_operand.vmem [shape: f32[1,32], index: 2, kind: input, shape index: {}]
  %s3 = inlined_call_operand.vmem [shape: f32[1,2,32], index: 3, kind: input, shape index: {}]
  %s4 = inlined_call_operand.hbm [shape: f32[8,2,32], index: 4, kind: output, shape index: {}]
  %s5 = sld [smem:[#allocation0]]
  $region22: #{tpu_custom_call.1} parent=0
    _
  %s7 = ssub.s32 1, %s5
  %s8 = scalar_select 0, %s7, %s5
  %9 = sst [smem:[#allocation3]] %s0
  $region1: #{tpu_custom_call.1} parent=0
    #allocation4 [shape = 'u8[8192]{0}', space=vmem, size = 0x2000, scoped, tag = 'output window, operand 0, single buffered']
    #allocation5 [shape = 's32[1]{0}', space=sflag, size = 0x4, scoped, tag = 'scoped memory for tpu_custom_call.1']
    %10 = vsyncpa [#allocation5], 0
    // Predicated region
    $region2: #{tpu_custom_call.1} parent=1 // pred_check
      _
    $region3: #{tpu_custom_call.1} parent=1 // pred_check_branch
      %12 = sbr.rel (0) target = $region5
    $region4: #{tpu_custom_call.1} parent=1 // pred_region
      _
    $region5: #{tpu_custom_call.1} parent=1 // pred_fallthru
      _
    // Predicated region
    $region6: #{tpu_custom_call.1} parent=1 // pred_check
      _
    $region7: #{tpu_custom_call.1} parent=1 // pred_check_branch
      %14 = sbr.rel (0) target = $region9
    $region8: #{tpu_custom_call.1} parent=1 // pred_region
      _
    $region9: #{tpu_custom_call.1} parent=1 // pred_fallthru
      _
    // Predicated region
    $region10: #{tpu_custom_call.1} parent=1 // pred_check
      _
    $region11: #{tpu_custom_call.1} parent=1 // pred_check_branch
      %16 = sbr.rel (0) target = $region13
    $region12: #{tpu_custom_call.1} parent=1 // pred_region
      _
    $region13: #{tpu_custom_call.1} parent=1 // pred_fallthru
      _
    %s17 = smul.u32 0, 8
    %v18 = vlaneseq
    %v19 = vshrl.u32 %v18, 7
    %v20 = vstv %s17
    %v21 = vadd.s32 %v20, %v19
    %v22 = vlaneseq
    %v23 = vand.u32 %v22, 127
    %v24 = vshra.s32 %v23, 2
    %s25 = sld [smem:[#allocation3]]
    %v26 = vmul.u32 %v21, 2654435769
    %v27 = vstv %s25
    %v28 = vadd.s32 %v27, %v26
    %v29 = vmul.u32 %v24, 2146121005
    %v30 = vadd.s32 %v28, %v29
    %v31 = vshra.s32 %v30, 16
    %v32 = vxor.u32 %v30, %v31
    %v33 = vmul.u32 %v32, 2246822507
    %v34 = vshra.s32 %v33, 13
    %v35 = vxor.u32 %v33, %v34
    %v36 = vmul.u32 %v35, 3266489909
    %v37 = vshra.s32 %v36, 16
    %v38 = vxor.u32 %v36, %v37
    %v39 = vand.u32 %v38, 16777215
    %vm40 = vcmp.ge.s32.totalorder %v39, 3355443
    %v41 = vld [vmem:[%s1] sm:$0xff]
    %v42 = vld [vmem:[%s2] sm:$0x1]
    %44 = vset.pattern.permute.xlu0 0
    %45 = vperm.xlu0 %44, %v41
    %v46 = vpop.permute.xlu0 %45
    %v49 = vlaneseq
    %v50 = vshrl.u32 %v49, 7
    %v51 = vsub.s32 0, %v50
    %v52 = vrot.slane %v42, %v51
    %v54 = vmul.f32 %v46, %v52
    %v55 = vsel %vm40, %v54, 0.0
    %v57 = vcombine.high %v55, %v55
    %v59 = vunpack.c.l.s4 1966171168
    %v60 = vunpack.c.0.s8 %v59
    %v61 = vlaneseq
    %v62 = vshrl.u32 %v61, 7
    %v63 = vsub.s32 %v60, %v62
    %v64 = vrot.slane %v55, %v63
    %v66 = vunpack.c.l.s4 1966171168
    %v67 = vunpack.c.0.s8 %v66
    %v68 = vlaneseq
    %v69 = vshrl.u32 %v68, 7
    %v70 = vsub.s32 %v67, %v69
    %v71 = vrot.slane %v57, %v70
    %v72 = vcombine.high %v64, %v64
    %v73 = vcombine.high %v71, %v71
    %v75 = vunpack.c.l.s4 1966171168
    %v76 = vunpack.c.0.s8 %v75
    %v77 = vlaneseq
    %v78 = vshrl.u32 %v77, 7
    %v79 = vsub.s32 %v76, %v78
    %v80 = vrot.slane %v64, %v79
    %v82 = vunpack.c.l.s4 1966171168
    %v83 = vunpack.c.0.s8 %v82
    %v84 = vlaneseq
    %v85 = vshrl.u32 %v84, 7
    %v86 = vsub.s32 %v83, %v85
    %v87 = vrot.slane %v71, %v86
    %v89 = vunpack.c.l.s4 1966171168
    %v90 = vunpack.c.0.s8 %v89
    %v91 = vlaneseq
    %v92 = vshrl.u32 %v91, 7
    %v93 = vsub.s32 %v90, %v92
    %v94 = vrot.slane %v72, %v93
    %v96 = vunpack.c.l.s4 1966171168
    %v97 = vunpack.c.0.s8 %v96
    %v98 = vlaneseq
    %v99 = vshrl.u32 %v98, 7
    %v100 = vsub.s32 %v97, %v99
    %v101 = vrot.slane %v73, %v100
    %v102 = vcombine.high %v80, %v80
    %v103 = vcombine.high %v87, %v87
    %v104 = vcombine.high %v94, %v94
    %v105 = vcombine.high %v101, %v101
    %v106 = vld [vmem:[%s3] sm:$0x3]
    %v107 = vlaneseq
    %v108 = vshrl.u32 %v107, 7
    %v109 = vsub.s32 0, %v108
    %v110 = vrot.slane %v80, %v109
    %v111 = vlaneseq
    %v112 = vshrl.u32 %v111, 7
    %v113 = vsub.s32 0, %v112
    %v114 = vrot.slane %v94, %v113
    %v115 = vlaneseq
    %v116 = vshrl.u32 %v115, 7
    %v117 = vsub.s32 0, %v116
    %v118 = vrot.slane %v102, %v117
    %v119 = vlaneseq
    %v120 = vshrl.u32 %v119, 7
    %v121 = vsub.s32 0, %v120
    %v122 = vrot.slane %v104, %v121
    %v123 = vlaneseq
    %v124 = vshrl.u32 %v123, 7
    %v125 = vsub.s32 0, %v124
    %v126 = vrot.slane %v87, %v125
    %v127 = vlaneseq
    %v128 = vshrl.u32 %v127, 7
    %v129 = vsub.s32 0, %v128
    %v130 = vrot.slane %v101, %v129
    %v131 = vlaneseq
    %v132 = vshrl.u32 %v131, 7
    %v133 = vsub.s32 0, %v132
    %v134 = vrot.slane %v103, %v133
    %v135 = vlaneseq
    %v136 = vshrl.u32 %v135, 7
    %v137 = vsub.s32 0, %v136
    %v138 = vrot.slane %v105, %v137
    %v147 = vmul.f32 %v110, %v106
    %v148 = vmul.f32 %v114, %v106
    %v149 = vmul.f32 %v118, %v106
    %v150 = vmul.f32 %v122, %v106
    %v151 = vmul.f32 %v126, %v106
    %v152 = vmul.f32 %v130, %v106
    %v153 = vmul.f32 %v134, %v106
    %v154 = vmul.f32 %v138, %v106
    %vm155 = vcmask 254976
    %156 = vst.msk [vmem:[#allocation4] sm:$0x3] %vm155, %v147
    %157 = vst.msk [vmem:[#allocation4 + $0x2] sm:$0x3] %vm155, %v148
    %158 = vst.msk [vmem:[#allocation4 + $0x4] sm:$0x3] %vm155, %v149
    %159 = vst.msk [vmem:[#allocation4 + $0x6] sm:$0x3] %vm155, %v150
    %160 = vst.msk [vmem:[#allocation4 + $0x8] sm:$0x3] %vm155, %v151
    %161 = vst.msk [vmem:[#allocation4 + $0xa] sm:$0x3] %vm155, %v152
    %162 = vst.msk [vmem:[#allocation4 + $0xc] sm:$0x3] %vm155, %v153
    %163 = vst.msk [vmem:[#allocation4 + $0xe] sm:$0x3] %vm155, %v154
    // Predicated region
    $region14: #{tpu_custom_call.1} parent=1 // pred_check
      _
    $region15: #{tpu_custom_call.1} parent=1 // pred_check_branch
      %165 = sbr.rel (0) target = $region17
    $region16: #{tpu_custom_call.1} parent=1 // pred_region
      %s167 = ssub.s32 256, 256
      %168 = vsyncadd [#allocation5], %s167
      %s169 = sshll.u32 [#allocation4], 4
      %s170 = int_to_ptr.vmem [resolvable:$true] %s169
      %175 = dma.vmem_to_hbm [thread:$0]  %s170, 256, %s4, [#allocation5], 32, 32, 2
    $region17: #{tpu_custom_call.1} parent=1 // pred_fallthru
      _
    // Predicated region
    $region18: #{tpu_custom_call.1} parent=1 // pred_check
      _
    $region19: #{tpu_custom_call.1} parent=1 // pred_check_branch
      %177 = sbr.rel (0) target = $region21
    $region20: #{tpu_custom_call.1} parent=1 // pred_region
      %178 = dma.done [#allocation5], 256
    $region21: #{tpu_custom_call.1} parent=1 // pred_fallthru
      _
    %179 = vsyncpa [#allocation5], 1

</llo_original>
